<compile_context>
chip_gen: v7x
topology: tpu7x:2x2x1
jax: 0.10.0
libtpu: 0.0.40
codegen_flags: <defaults>
</compile_context>

<pallas_src>
import functools

import jax
import jax.numpy as jnp
from jax.experimental import pallas as pl
from jax.experimental.pallas import tpu as pltpu

NEG_SLOPE = 0.2


def _round_up(x, m):
    return ((x + m - 1) // m) * m


def kinship_kernel(feat_ref, w1f_ref, b1f_ref, w1r_ref, b1r_ref,
                   w2b_ref, b2_ref, y_ref, out_ref, z_all_ref,
                   *, num_experts, hidden):
    """One batch tile of the cascaded experts + block-diagonal fc2.

    feat_ref : (Bt, D_in)   bf16  input feature tile
    w1f_ref  : (D_in, H)    bf16  fc1 weight of expert 0 (transposed vs torch)
    b1f_ref  : (1, H)       f32   fc1 bias of expert 0
    w1r_ref  : (E-1, H, H)  bf16  fc1 weights of experts 1..E-1
    b1r_ref  : (E-1, H)     f32   fc1 biases  of experts 1..E-1
    w2b_ref  : (E*H, E)     bf16  block-diagonal fc2 weight
    b2_ref   : (1, E)       f32   fc2 biases (row)
    y_ref    : (Bt, E)      f32   selection mask tile
    out_ref  : (Bt, E)      f32   selected predictions tile
    z_all_ref: (Bt, E*H)    bf16  VMEM scratch holding every expert's z1
    """
    h = feat_ref[...]                                     # (Bt, D_in) bf16

    for i in range(num_experts):                          # static unroll
        if i == 0:
            w1 = w1f_ref[...]                             # (D_in, H) bf16
            b1 = b1f_ref[...]                             # (1, H)    f32
        else:
            w1 = w1r_ref[i - 1]                           # (H, H)    bf16
            b1 = b1r_ref[i - 1:i, :]                      # (1, H)    f32

        # fc1 on the MXU: bf16 operands, f32 accumulation; elementwise in f32.
        z1 = jnp.dot(h, w1, preferred_element_type=jnp.float32) + b1
        z1 = jnp.maximum(z1, NEG_SLOPE * z1)              # leaky_relu(0.2)
        h = z1.astype(jnp.bfloat16)                       # cascade carrier
        z_all_ref[:, i * hidden:(i + 1) * hidden] = h     # contiguous lane slice

    # All E fc2 heads in one MXU pass via the block-diagonal weight.
    logits = jnp.dot(z_all_ref[...], w2b_ref[...],
                     preferred_element_type=jnp.float32) + b2_ref[...]
    out_ref[...] = jax.nn.sigmoid(logits) * y_ref[...]    # selected_prediction


def kinship_comparator(features, y, params, *, block_b=None):
    """Pallas forward pass of KinshipComparator."""
    w1f, b1f, w1r, b1r, w2, b2 = params
    B, D_in = features.shape
    E = y.shape[1]
    H = w1f.shape[1]

    # Guard zero-extent cascade weights when num_experts == 1 (never read).
    if w1r.shape[0] == 0:
        w1r = jnp.zeros((1, H, H), w1r.dtype)
        b1r = jnp.zeros((1, H), b1r.dtype)

    # bf16 MXU operands; biases stay f32.
    feat_b = features.astype(jnp.bfloat16)
    w1f_b = w1f.astype(jnp.bfloat16)
    w1r_b = w1r.astype(jnp.bfloat16)
    b1f_f = b1f.astype(jnp.float32).reshape(1, H)
    b1r_f = b1r.astype(jnp.float32)

    # Block-diagonal fc2 weight: rows i*H..(i+1)*H of column i hold w2_i.
    w2_f = w2.astype(jnp.float32)                          # (E, H)
    eye = jnp.eye(E, dtype=jnp.float32)
    w2_big = (w2_f[:, :, None] * eye[:, None, :]).reshape(E * H, E)
    w2_big = w2_big.astype(jnp.bfloat16)                   # (E*H, E)
    b2_row = b2.reshape(1, E).astype(jnp.float32)

    y_f = y.astype(jnp.float32)

    if block_b is None:
        # Multiple of 8, at least 2 grid steps when B >= 16, capped at 1024.
        block_b = min(_round_up(max(pl.cdiv(B, 2), 1), 8), 1024)
    grid = (pl.cdiv(B, block_b),)

    # Cost / VMEM bookkeeping.
    flops = 2 * B * (D_in * H + max(E - 1, 0) * H * H + E * H * E)
    weight_bytes = (w1f_b.size * 2 + w1r_b.size * 2 + w2_big.size * 2
                    + (b1f_f.size + b1r_f.size + b2_row.size) * 4)
    bytes_accessed = (feat_b.size * 2 + y_f.size * 4 + B * E * 4 + weight_bytes)
    tile_bytes = block_b * (D_in * 2 + 2 * E * 4)          # feat + y + out rows
    scratch_bytes = block_b * E * H * 2
    vmem_need = 2 * (tile_bytes + weight_bytes) + scratch_bytes + (2 << 20)
    vmem_limit = int(min(max(vmem_need, 32 * 1024 * 1024), 64 * 1024 * 1024))

    kernel = functools.partial(kinship_kernel, num_experts=E, hidden=H)

    out = pl.pallas_call(
        kernel,
        out_shape=jax.ShapeDtypeStruct((B, E), jnp.float32),
        grid=grid,
        in_specs=[
            pl.BlockSpec((block_b, D_in), lambda i: (i, 0)),    # features tile
            pl.BlockSpec(w1f_b.shape, lambda i: (0, 0)),        # resident
            pl.BlockSpec(b1f_f.shape, lambda i: (0, 0)),        # resident
            pl.BlockSpec(w1r_b.shape, lambda i: (0, 0, 0)),     # resident
            pl.BlockSpec(b1r_f.shape, lambda i: (0, 0)),        # resident
            pl.BlockSpec(w2_big.shape, lambda i: (0, 0)),       # resident
            pl.BlockSpec(b2_row.shape, lambda i: (0, 0)),       # resident
            pl.BlockSpec((block_b, E), lambda i: (i, 0)),       # y tile
        ],
        out_specs=pl.BlockSpec((block_b, E), lambda i: (i, 0)),
        scratch_shapes=[pltpu.VMEM((block_b, E * H), jnp.bfloat16)],
        compiler_params=pltpu.CompilerParams(
            dimension_semantics=("parallel",),
            vmem_limit_bytes=vmem_limit),
        cost_estimate=pl.CostEstimate(
            flops=flops,
            transcendentals=B * E,
            bytes_accessed=bytes_accessed),
    )(feat_b, w1f_b, b1f_f, w1r_b, b1r_f, w2_big, b2_row, y_f)

    return out


def init_params(key, input_size, hidden_size, num_experts):
    """Deterministic init mimicking torch.nn.Linear defaults (f32 master copy)."""
    ks = jax.random.split(key, 4 * num_experts)
    k_iter = iter(ks)

    def unif(k, shape, fan_in):
        bound = 1.0 / jnp.sqrt(jnp.asarray(fan_in, jnp.float32))
        return jax.random.uniform(k, shape, jnp.float32, -bound, bound)

    # Expert 0 fc1: (D_in, H) stored transposed so kernel does x @ W.
    w1f = unif(next(k_iter), (input_size, hidden_size), input_size)
    b1f = unif(next(k_iter), (1, hidden_size), input_size)

    # Experts 1..E-1 fc1: (E-1, H, H)
    w1r_list, b1r_list = [], []
    for _ in range(num_experts - 1):
        w1r_list.append(unif(next(k_iter), (hidden_size, hidden_size), hidden_size))
        b1r_list.append(unif(next(k_iter), (hidden_size,), hidden_size))
    if num_experts > 1:
        w1r = jnp.stack(w1r_list)
        b1r = jnp.stack(b1r_list)
    else:
        w1r = jnp.zeros((0, hidden_size, hidden_size), jnp.float32)
        b1r = jnp.zeros((0, hidden_size), jnp.float32)

    # fc2 for every expert: weight (1, H) -> stacked (E, H); bias scalar -> (1, E).
    w2_list, b2_list = [], []
    for _ in range(num_experts):
        w2_list.append(unif(next(k_iter), (hidden_size,), hidden_size))
        b2_list.append(unif(next(k_iter), (1,), hidden_size))
    w2 = jnp.stack(w2_list)                       # (E, H)
    b2 = jnp.concatenate(b2_list).reshape(1, -1)  # (1, E)

    return (w1f, b1f, w1r, b1r, w2, b2)


def reference_forward(features, y, params):
    """Pure-JAX f32 reference matching the PyTorch module semantics."""
    w1f, b1f, w1r, b1r, w2, b2 = params
    num_experts = w2.shape[0]
    h = features
    preds = []
    for i in range(num_experts):
        if i == 0:
            w1, b1 = w1f, b1f
        else:
            w1, b1 = w1r[i - 1], b1r[i - 1:i]
        z1 = h @ w1 + b1
        z1 = jnp.where(z1 >= 0, z1, NEG_SLOPE * z1)
        z2 = jax.nn.sigmoid(jnp.sum(z1 * w2[i:i + 1], axis=-1, keepdims=True)
                            + b2[:, i:i + 1])
        preds.append(z2)
        h = z1
    return jnp.concatenate(preds, axis=1) * y


if __name__ == "__main__":
    key = jax.random.PRNGKey(0)
    k_feat, k_y, k_param = jax.random.split(key, 3)

    batch = 8
    input_size = 32
    hidden_size = 32
    num_kinship_relations = 4

    features = jax.random.normal(k_feat, (batch, input_size), jnp.float32)
    # y: one-hot-style selection over kinship relations (B, E)
    y_idx = jax.random.randint(k_y, (batch,), 0, num_kinship_relations)
    y = jax.nn.one_hot(y_idx, num_kinship_relations, dtype=jnp.float32)

    params = init_params(k_param, input_size, hidden_size, num_kinship_relations)

    out = kinship_comparator(features, y, params)
    out = jax.block_until_ready(out)

    ref = reference_forward(features, y, params)
    assert out.shape == (batch, num_kinship_relations)
    # bf16 MXU operands (fc1 cascade + block-diagonal fc2) -> loosened tolerance.
    assert jnp.allclose(out, ref, atol=2e-2, rtol=2e-2)

    print("KERNEL_OK")
</pallas_src>

<mosaic_0001>
module attributes {stable_mosaic.version = 11 : i64} {
  func.func @kinship_kernel(%arg0: i32, %arg1: memref<8x32xbf16, #tpu.memory_space<vmem>>, %arg2: memref<32x32xbf16, #tpu.memory_space<vmem>>, %arg3: memref<1x32xf32, #tpu.memory_space<vmem>>, %arg4: memref<3x32x32xbf16, #tpu.memory_space<vmem>>, %arg5: memref<3x32xf32, #tpu.memory_space<vmem>>, %arg6: memref<128x4xbf16, #tpu.memory_space<vmem>>, %arg7: memref<1x4xf32, #tpu.memory_space<vmem>>, %arg8: memref<8x4xf32, #tpu.memory_space<vmem>>, %arg9: memref<8x4xf32, #tpu.memory_space<vmem>>, %arg10: memref<8x128xbf16, #tpu.memory_space<vmem>>) attributes {dimension_semantics = [#tpu.dimension_semantics<parallel>], iteration_bounds = array<i64: 1>, scalar_prefetch = 0 : i64, scratch_operands = 1 : i64, tpu.core_type = #tpu.core_type<tc>, window_params = [{transform_indices = @transform_0, window_bounds = array<i64: 8, 32>}, {pipeline_mode = #tpu.pipeline_mode<synchronous>, transform_indices = @transform_1, window_bounds = array<i64: 32, 32>}, {pipeline_mode = #tpu.pipeline_mode<synchronous>, transform_indices = @transform_2, window_bounds = array<i64: 1, 32>}, {pipeline_mode = #tpu.pipeline_mode<synchronous>, transform_indices = @transform_3, window_bounds = array<i64: 3, 32, 32>}, {pipeline_mode = #tpu.pipeline_mode<synchronous>, transform_indices = @transform_4, window_bounds = array<i64: 3, 32>}, {pipeline_mode = #tpu.pipeline_mode<synchronous>, transform_indices = @transform_5, window_bounds = array<i64: 128, 4>}, {pipeline_mode = #tpu.pipeline_mode<synchronous>, transform_indices = @transform_6, window_bounds = array<i64: 1, 4>}, {transform_indices = @transform_7, window_bounds = array<i64: 8, 4>}, {transform_indices = @transform_8, window_bounds = array<i64: 8, 4>}]} {
    %c0 = arith.constant 0 : index
    %c0_0 = arith.constant 0 : index
    %0 = vector.load %arg1[%c0, %c0_0] : memref<8x32xbf16, #tpu.memory_space<vmem>>, vector<8x32xbf16>
    %c0_1 = arith.constant 0 : index
    %c0_2 = arith.constant 0 : index
    %1 = vector.load %arg2[%c0_1, %c0_2] : memref<32x32xbf16, #tpu.memory_space<vmem>>, vector<32x32xbf16>
    %c0_3 = arith.constant 0 : index
    %c0_4 = arith.constant 0 : index
    %2 = vector.load %arg3[%c0_3, %c0_4] : memref<1x32xf32, #tpu.memory_space<vmem>>, vector<1x32xf32>
    %cst = arith.constant dense<0.000000e+00> : vector<8x32xf32>
    %3 = tpu.matmul %0, %1, %cst {dimension_numbers = #tpu.dot_dimension_numbers<[1], [0], [0], [1], [0, 0, 1, 1], [], []>} : vector<8x32xbf16>, vector<32x32xbf16>, vector<8x32xf32> -> vector<8x32xf32>
    %4 = vector.broadcast %2 : vector<1x32xf32> to vector<8x32xf32>
    %5 = arith.addf %3, %4 : vector<8x32xf32>
    %cst_5 = arith.constant 2.000000e-01 : f32
    %6 = vector.broadcast %cst_5 : f32 to vector<8x32xf32>
    %7 = arith.mulf %6, %5 : vector<8x32xf32>
    %8 = arith.maximumf %5, %7 : vector<8x32xf32>
    %9 = arith.truncf %8 : vector<8x32xf32> to vector<8x32xbf16>
    %c0_6 = arith.constant 0 : index
    %c0_7 = arith.constant 0 : index
    %10 = vector.load %arg10[%c0_6, %c0_7] : memref<8x128xbf16, #tpu.memory_space<vmem>>, vector<8x32xbf16>
    tpu.vector_store %arg10[%c0_6, %c0_7], %9 {strides = array<i32>} : memref<8x128xbf16, #tpu.memory_space<vmem>>, vector<8x32xbf16>,
    %c0_8 = arith.constant 0 : index
    %c0_9 = arith.constant 0 : index
    %c0_10 = arith.constant 0 : index
    %11 = vector.load %arg4[%c0_8, %c0_9, %c0_10] : memref<3x32x32xbf16, #tpu.memory_space<vmem>>, vector<1x32x32xbf16>
    %12 = vector.shape_cast %11 : vector<1x32x32xbf16> to vector<32x32xbf16>
    %c0_11 = arith.constant 0 : index
    %c0_12 = arith.constant 0 : index
    %13 = vector.load %arg5[%c0_11, %c0_12] : memref<3x32xf32, #tpu.memory_space<vmem>>, vector<1x32xf32>
    %cst_13 = arith.constant dense<0.000000e+00> : vector<8x32xf32>
    %14 = tpu.matmul %9, %12, %cst_13 {dimension_numbers = #tpu.dot_dimension_numbers<[1], [0], [0], [1], [0, 0, 1, 1], [], []>} : vector<8x32xbf16>, vector<32x32xbf16>, vector<8x32xf32> -> vector<8x32xf32>
    %15 = vector.broadcast %13 : vector<1x32xf32> to vector<8x32xf32>
    %16 = arith.addf %14, %15 : vector<8x32xf32>
    %cst_14 = arith.constant 2.000000e-01 : f32
    %17 = vector.broadcast %cst_14 : f32 to vector<8x32xf32>
    %18 = arith.mulf %17, %16 : vector<8x32xf32>
    %19 = arith.maximumf %16, %18 : vector<8x32xf32>
    %20 = arith.truncf %19 : vector<8x32xf32> to vector<8x32xbf16>
    %c0_15 = arith.constant 0 : index
    %c32 = arith.constant 32 : index
    %21 = vector.load %arg10[%c0_15, %c32] : memref<8x128xbf16, #tpu.memory_space<vmem>>, vector<8x32xbf16>
    tpu.vector_store %arg10[%c0_15, %c32], %20 {strides = array<i32>} : memref<8x128xbf16, #tpu.memory_space<vmem>>, vector<8x32xbf16>,
    %c1 = arith.constant 1 : index
    %c0_16 = arith.constant 0 : index
    %c0_17 = arith.constant 0 : index
    %22 = vector.load %arg4[%c1, %c0_16, %c0_17] : memref<3x32x32xbf16, #tpu.memory_space<vmem>>, vector<1x32x32xbf16>
    %23 = vector.shape_cast %22 : vector<1x32x32xbf16> to vector<32x32xbf16>
    %c1_18 = arith.constant 1 : index
    %c0_19 = arith.constant 0 : index
    %24 = vector.load %arg5[%c1_18, %c0_19] : memref<3x32xf32, #tpu.memory_space<vmem>>, vector<1x32xf32>
    %cst_20 = arith.constant dense<0.000000e+00> : vector<8x32xf32>
    %25 = tpu.matmul %20, %23, %cst_20 {dimension_numbers = #tpu.dot_dimension_numbers<[1], [0], [0], [1], [0, 0, 1, 1], [], []>} : vector<8x32xbf16>, vector<32x32xbf16>, vector<8x32xf32> -> vector<8x32xf32>
    %26 = vector.broadcast %24 : vector<1x32xf32> to vector<8x32xf32>
    %27 = arith.addf %25, %26 : vector<8x32xf32>
    %cst_21 = arith.constant 2.000000e-01 : f32
    %28 = vector.broadcast %cst_21 : f32 to vector<8x32xf32>
    %29 = arith.mulf %28, %27 : vector<8x32xf32>
    %30 = arith.maximumf %27, %29 : vector<8x32xf32>
    %31 = arith.truncf %30 : vector<8x32xf32> to vector<8x32xbf16>
    %c0_22 = arith.constant 0 : index
    %c64 = arith.constant 64 : index
    %32 = vector.load %arg10[%c0_22, %c64] : memref<8x128xbf16, #tpu.memory_space<vmem>>, vector<8x32xbf16>
    tpu.vector_store %arg10[%c0_22, %c64], %31 {strides = array<i32>} : memref<8x128xbf16, #tpu.memory_space<vmem>>, vector<8x32xbf16>,
    %c2 = arith.constant 2 : index
    %c0_23 = arith.constant 0 : index
    %c0_24 = arith.constant 0 : index
    %33 = vector.load %arg4[%c2, %c0_23, %c0_24] : memref<3x32x32xbf16, #tpu.memory_space<vmem>>, vector<1x32x32xbf16>
    %34 = vector.shape_cast %33 : vector<1x32x32xbf16> to vector<32x32xbf16>
    %c2_25 = arith.constant 2 : index
    %c0_26 = arith.constant 0 : index
    %35 = vector.load %arg5[%c2_25, %c0_26] : memref<3x32xf32, #tpu.memory_space<vmem>>, vector<1x32xf32>
    %cst_27 = arith.constant dense<0.000000e+00> : vector<8x32xf32>
    %36 = tpu.matmul %31, %34, %cst_27 {dimension_numbers = #tpu.dot_dimension_numbers<[1], [0], [0], [1], [0, 0, 1, 1], [], []>} : vector<8x32xbf16>, vector<32x32xbf16>, vector<8x32xf32> -> vector<8x32xf32>
    %37 = vector.broadcast %35 : vector<1x32xf32> to vector<8x32xf32>
    %38 = arith.addf %36, %37 : vector<8x32xf32>
    %cst_28 = arith.constant 2.000000e-01 : f32
    %39 = vector.broadcast %cst_28 : f32 to vector<8x32xf32>
    %40 = arith.mulf %39, %38 : vector<8x32xf32>
    %41 = arith.maximumf %38, %40 : vector<8x32xf32>
    %42 = arith.truncf %41 : vector<8x32xf32> to vector<8x32xbf16>
    %c0_29 = arith.constant 0 : index
    %c96 = arith.constant 96 : index
    %43 = vector.load %arg10[%c0_29, %c96] : memref<8x128xbf16, #tpu.memory_space<vmem>>, vector<8x32xbf16>
    tpu.vector_store %arg10[%c0_29, %c96], %42 {strides = array<i32>} : memref<8x128xbf16, #tpu.memory_space<vmem>>, vector<8x32xbf16>,
    %c0_30 = arith.constant 0 : index
    %c0_31 = arith.constant 0 : index
    %44 = vector.load %arg10[%c0_30, %c0_31] : memref<8x128xbf16, #tpu.memory_space<vmem>>, vector<8x128xbf16>
    %c0_32 = arith.constant 0 : index
    %c0_33 = arith.constant 0 : index
    %45 = vector.load %arg6[%c0_32, %c0_33] : memref<128x4xbf16, #tpu.memory_space<vmem>>, vector<128x4xbf16>
    %cst_34 = arith.constant dense<0.000000e+00> : vector<8x4xf32>
    %46 = tpu.matmul %44, %45, %cst_34 {dimension_numbers = #tpu.dot_dimension_numbers<[1], [0], [0], [1], [0, 0, 1, 1], [], []>} : vector<8x128xbf16>, vector<128x4xbf16>, vector<8x4xf32> -> vector<8x4xf32>
    %c0_35 = arith.constant 0 : index
    %c0_36 = arith.constant 0 : index
    %47 = vector.load %arg7[%c0_35, %c0_36] : memref<1x4xf32, #tpu.memory_space<vmem>>, vector<1x4xf32>
    %48 = vector.broadcast %47 : vector<1x4xf32> to vector<8x4xf32>
    %49 = arith.addf %46, %48 : vector<8x4xf32>
    %50 = arith.negf %49 : vector<8x4xf32>
    %51 = math.exp %50 : vector<8x4xf32>
    %cst_37 = arith.constant 1.000000e+00 : f32
    %52 = vector.broadcast %cst_37 : f32 to vector<8x4xf32>
    %53 = arith.addf %52, %51 : vector<8x4xf32>
    %54 = arith.divf %52, %53 : vector<8x4xf32>
    %c0_38 = arith.constant 0 : index
    %c0_39 = arith.constant 0 : index
    %55 = vector.load %arg8[%c0_38, %c0_39] : memref<8x4xf32, #tpu.memory_space<vmem>>, vector<8x4xf32>
    %56 = arith.mulf %54, %55 : vector<8x4xf32>
    %c0_40 = arith.constant 0 : index
    %c0_41 = arith.constant 0 : index
    %57 = vector.load %arg9[%c0_40, %c0_41] : memref<8x4xf32, #tpu.memory_space<vmem>>, vector<8x4xf32>
    tpu.vector_store %arg9[%c0_40, %c0_41], %56 {strides = array<i32>} : memref<8x4xf32, #tpu.memory_space<vmem>>, vector<8x4xf32>,
    return
  }
  func.func @transform_0(%arg0: i32) -> (i32, i32) {
    %c0_i32 = arith.constant 0 : i32
    %c0_i32_0 = arith.constant 0 : i32
    return %arg0, %c0_i32 : i32, i32
  }
  func.func @transform_1(%arg0: i32) -> (i32, i32) {
    %c0_i32 = arith.constant 0 : i32
    %c0_i32_0 = arith.constant 0 : i32
    %c0_i32_1 = arith.constant 0 : i32
    return %c0_i32, %c0_i32_0 : i32, i32
  }
  func.func @transform_2(%arg0: i32) -> (i32, i32) {
    %c0_i32 = arith.constant 0 : i32
    %c0_i32_0 = arith.constant 0 : i32
    %c0_i32_1 = arith.constant 0 : i32
    return %c0_i32, %c0_i32_0 : i32, i32
  }
  func.func @transform_3(%arg0: i32) -> (i32, i32, i32) {
    %c0_i32 = arith.constant 0 : i32
    %c0_i32_0 = arith.constant 0 : i32
    %c0_i32_1 = arith.constant 0 : i32
    %c0_i32_2 = arith.constant 0 : i32
    return %c0_i32, %c0_i32_0, %c0_i32_1 : i32, i32, i32
  }
  func.func @transform_4(%arg0: i32) -> (i32, i32) {
    %c0_i32 = arith.constant 0 : i32
    %c0_i32_0 = arith.constant 0 : i32
    %c0_i32_1 = arith.constant 0 : i32
    return %c0_i32, %c0_i32_0 : i32, i32
  }
  func.func @transform_5(%arg0: i32) -> (i32, i32) {
    %c0_i32 = arith.constant 0 : i32
    %c0_i32_0 = arith.constant 0 : i32
    %c0_i32_1 = arith.constant 0 : i32
    return %c0_i32, %c0_i32_0 : i32, i32
  }
  func.func @transform_6(%arg0: i32) -> (i32, i32) {
    %c0_i32 = arith.constant 0 : i32
    %c0_i32_0 = arith.constant 0 : i32
    %c0_i32_1 = arith.constant 0 : i32
    return %c0_i32, %c0_i32_0 : i32, i32
  }
  func.func @transform_7(%arg0: i32) -> (i32, i32) {
    %c0_i32 = arith.constant 0 : i32
    %c0_i32_0 = arith.constant 0 : i32
    return %arg0, %c0_i32 : i32, i32
  }
  func.func @transform_8(%arg0: i32) -> (i32, i32) {
    %c0_i32 = arith.constant 0 : i32
    %c0_i32_0 = arith.constant 0 : i32
    return %arg0, %c0_i32 : i32, i32
  }
}

</mosaic_0001>

<llo_original>
// kernel: tpu_custom_call.1
$region0: #{tpu_custom_call.1}
  #allocation0 [shape = 'u32[]', space=smem, size = 0x4, offset = 0x4, fixed_abs, tag = 'smem constant byte address 0x4 - core index']
  #allocation1 [shape = 'u32[144,128]{1,0:T(1,128)}', space=vmem, size = 0x12000, scoped, tag = 'internal scratch']
  #allocation2 [shape = 'bf16[8,128]{1,0:T(8,128)(2,1)}', space=vmem, size = 0x800, scoped, tag = 'scratch operand']
  %s0 = inlined_call_operand.vmem [shape: bf16[8,32], index: 0, kind: input, shape index: {}]
  %s1 = inlined_call_operand.vmem [shape: bf16[32,32], index: 1, kind: input, shape index: {}]
  %s2 = inlined_call_operand.vmem [shape: f32[1,32], index: 2, kind: input, shape index: {}]
  %s3 = inlined_call_operand.vmem [shape: bf16[3,32,32], index: 3, kind: input, shape index: {}]
  %s4 = inlined_call_operand.vmem [shape: f32[3,32], index: 4, kind: input, shape index: {}]
  %s5 = inlined_call_operand.vmem [shape: bf16[128,4], index: 5, kind: input, shape index: {}]
  %s6 = inlined_call_operand.vmem [shape: f32[1,4], index: 6, kind: input, shape index: {}]
  %s7 = inlined_call_operand.vmem [shape: f32[8,4], index: 7, kind: input, shape index: {}]
  %s8 = inlined_call_operand.vmem [shape: f32[8,4], index: 8, kind: output, shape index: {}]
  %s9 = sld [smem:[#allocation0]]
  $region42: #{tpu_custom_call.1} parent=0
    _
  %s11 = ssub.s32 1, %s9
  %s12 = scalar_select 0, %s11, %s9
  // Predicated region
  $region2: #{tpu_custom_call.1} parent=0 // pred_check
    _
  $region3: #{tpu_custom_call.1} parent=0 // pred_check_branch
    %14 = sbr.rel (0) target = $region5
  $region4: #{tpu_custom_call.1} parent=0 // pred_region
    _
  $region5: #{tpu_custom_call.1} parent=0 // pred_fallthru
    _
  // Predicated region
  $region6: #{tpu_custom_call.1} parent=0 // pred_check
    _
  $region7: #{tpu_custom_call.1} parent=0 // pred_check_branch
    %16 = sbr.rel (0) target = $region9
  $region8: #{tpu_custom_call.1} parent=0 // pred_region
    _
  $region9: #{tpu_custom_call.1} parent=0 // pred_fallthru
    _
  // Predicated region
  $region10: #{tpu_custom_call.1} parent=0 // pred_check
    _
  $region11: #{tpu_custom_call.1} parent=0 // pred_check_branch
    %18 = sbr.rel (0) target = $region13
  $region12: #{tpu_custom_call.1} parent=0 // pred_region
    _
  $region13: #{tpu_custom_call.1} parent=0 // pred_fallthru
    _
  // Predicated region
  $region14: #{tpu_custom_call.1} parent=0 // pred_check
    _
  $region15: #{tpu_custom_call.1} parent=0 // pred_check_branch
    %20 = sbr.rel (0) target = $region17
  $region16: #{tpu_custom_call.1} parent=0 // pred_region
    _
  $region17: #{tpu_custom_call.1} parent=0 // pred_fallthru
    _
  // Predicated region
  $region18: #{tpu_custom_call.1} parent=0 // pred_check
    _
  $region19: #{tpu_custom_call.1} parent=0 // pred_check_branch
    %22 = sbr.rel (0) target = $region21
  $region20: #{tpu_custom_call.1} parent=0 // pred_region
    _
  $region21: #{tpu_custom_call.1} parent=0 // pred_fallthru
    _
  // Predicated region
  $region22: #{tpu_custom_call.1} parent=0 // pred_check
    _
  $region23: #{tpu_custom_call.1} parent=0 // pred_check_branch
    %24 = sbr.rel (0) target = $region25
  $region24: #{tpu_custom_call.1} parent=0 // pred_region
    _
  $region25: #{tpu_custom_call.1} parent=0 // pred_fallthru
    _
  // Predicated region
  $region26: #{tpu_custom_call.1} parent=0 // pred_check
    _
  $region27: #{tpu_custom_call.1} parent=0 // pred_check_branch
    %26 = sbr.rel (0) target = $region29
  $region28: #{tpu_custom_call.1} parent=0 // pred_region
    _
  $region29: #{tpu_custom_call.1} parent=0 // pred_fallthru
    _
  // Predicated region
  $region30: #{tpu_custom_call.1} parent=0 // pred_check
    _
  $region31: #{tpu_custom_call.1} parent=0 // pred_check_branch
    %28 = sbr.rel (0) target = $region33
  $region32: #{tpu_custom_call.1} parent=0 // pred_region
    _
  $region33: #{tpu_custom_call.1} parent=0 // pred_fallthru
    _
  %v30 = vld [vmem:[%s0] sm:$0xf]
  %v31 = vld [vmem:[%s1] sm:$0xf]
  %v32 = vld [vmem:[%s1 + $0x4] sm:$0xf]
  %v33 = vld [vmem:[%s1 + $0x8] sm:$0xf]
  %v34 = vld [vmem:[%s1 + $0xc] sm:$0xf]
  %v35 = vld [vmem:[%s2] sm:$0x1]
  %v37 = vlaneseq
  %v38 = vshrl.u32 %v37, 7
  %v39 = vsub.s32 0, %v38
  %v40 = vrot.slane %v35, %v39
  %v46 = vunpack.c.l.b16 %v31
  %v47 = vunpack.c.l.b16 %v32
  %v48 = vunpack.c.l.b16 %v33
  %v49 = vunpack.c.l.b16 %v34
  %v50 = vpack.c.b16 %v47, %v46
  %v51 = vpack.c.b16 %v49, %v48
  %vm54 = vcmask 261120
  %v56 = vsel %vm54, %v30, 0
  %58 = vmatprep.subr.bf16.mxu0 0
  %59 = vmatpush1.bf16.msra.mxu0 %v50
  %60 = vmatprep.subr.bf16.mxu0 0
  %61 = vmatpush1.bf16.msra.mxu0 %v51
  %62 = vmatprep.subr.bf16.mxu0 0
  %63 = vmatpush1.bf16.msra.mxu0 0
  %64 = vmatprep.subr.bf16.mxu0 0
  %65 = vmatpush1.bf16.msra.mxu0 0
  %66 = vmatprep.subr.bf16.mxu0 0
  %67 = vmatpush1.bf16.msra.mxu0 0
  %68 = vmatprep.subr.bf16.mxu0 0
  %69 = vmatpush1.bf16.msra.mxu0 0
  %70 = vmatprep.subr.bf16.mxu0 0
  %71 = vmatpush1.bf16.msra.mxu0 0
  %72 = vmatprep.subr.bf16.mxu0 0
  %73 = vmatpush1.bf16.msra.mxu0 0
  %74 = vmatprep.subr.bf16.mxu0 0
  %75 = vmatpush1.bf16.msra.mxu0 0
  %76 = vmatprep.subr.bf16.mxu0 0
  %77 = vmatpush1.bf16.msra.mxu0 0
  %78 = vmatprep.subr.bf16.mxu0 0
  %79 = vmatpush1.bf16.msra.mxu0 0
  %80 = vmatprep.subr.bf16.mxu0 0
  %81 = vmatpush1.bf16.msra.mxu0 0
  %82 = vmatprep.subr.bf16.mxu0 0
  %83 = vmatpush1.bf16.msra.mxu0 0
  %84 = vmatprep.subr.bf16.mxu0 0
  %85 = vmatpush1.bf16.msra.mxu0 0
  %86 = vmatprep.subr.bf16.mxu0 0
  %87 = vmatpush1.bf16.msra.mxu0 0
  %88 = vmatprep.subr.bf16.mxu0 0
  %89 = vmatpush1.bf16.msra.mxu0 0
  %90 = vmatprep.mubr.bf16.mxu0 0
  %91 = vmatmul.mubr.bf16.gmra.mrb[0].mxu0 %v56
  %v92 = vpop.f32.mrb[0].mxu0
  %v93 = vadd.f32 %v40, %v92
  %v94 = vpop.f32.mrb[0].mxu0
  %v95 = vpop.f32.mrb[0].mxu0
  %v96 = vpop.f32.mrb[0].mxu0
  %97 = vdwg.mxu0
  %v98 = vmul.f32 %v93, 0.2
  %v99 = vmax.f32 %v93, %v98
  %v100 = vpack.c.bf16 %v99, %v99
  %vm101 = vcmask 257024
  %102 = vst.msk [vmem:[#allocation2] sm:$0xf] %vm101, %v100
  %v103 = vld [vmem:[%s3] sm:$0xf]
  %v104 = vld [vmem:[%s3 + $0x4] sm:$0xf]
  %v105 = vld [vmem:[%s3 + $0x8] sm:$0xf]
  %v106 = vld [vmem:[%s3 + $0xc] sm:$0xf]
  %v107 = vld [vmem:[%s4] sm:$0x1]
  %v108 = vlaneseq
  %v109 = vshrl.u32 %v108, 7
  %v110 = vsub.s32 0, %v109
  %v111 = vrot.slane %v107, %v110
  %v116 = vunpack.c.l.b16 %v103
  %v117 = vunpack.c.l.b16 %v104
  %v118 = vunpack.c.l.b16 %v105
  %v119 = vunpack.c.l.b16 %v106
  %v120 = vpack.c.b16 %v117, %v116
  %v121 = vpack.c.b16 %v119, %v118
  %v125 = vsel %vm54, %v100, 0
  %127 = vmatprep.subr.bf16.mxu0 0
  %128 = vmatpush1.bf16.msra.mxu0 %v120
  %129 = vmatprep.subr.bf16.mxu0 0
  %130 = vmatpush1.bf16.msra.mxu0 %v121
  %131 = vmatprep.subr.bf16.mxu0 0
  %132 = vmatpush1.bf16.msra.mxu0 0
  %133 = vmatprep.subr.bf16.mxu0 0
  %134 = vmatpush1.bf16.msra.mxu0 0
  %135 = vmatprep.subr.bf16.mxu0 0
  %136 = vmatpush1.bf16.msra.mxu0 0
  %137 = vmatprep.subr.bf16.mxu0 0
  %138 = vmatpush1.bf16.msra.mxu0 0
  %139 = vmatprep.subr.bf16.mxu0 0
  %140 = vmatpush1.bf16.msra.mxu0 0
  %141 = vmatprep.subr.bf16.mxu0 0
  %142 = vmatpush1.bf16.msra.mxu0 0
  %143 = vmatprep.subr.bf16.mxu0 0
  %144 = vmatpush1.bf16.msra.mxu0 0
  %145 = vmatprep.subr.bf16.mxu0 0
  %146 = vmatpush1.bf16.msra.mxu0 0
  %147 = vmatprep.subr.bf16.mxu0 0
  %148 = vmatpush1.bf16.msra.mxu0 0
  %149 = vmatprep.subr.bf16.mxu0 0
  %150 = vmatpush1.bf16.msra.mxu0 0
  %151 = vmatprep.subr.bf16.mxu0 0
  %152 = vmatpush1.bf16.msra.mxu0 0
  %153 = vmatprep.subr.bf16.mxu0 0
  %154 = vmatpush1.bf16.msra.mxu0 0
  %155 = vmatprep.subr.bf16.mxu0 0
  %156 = vmatpush1.bf16.msra.mxu0 0
  %157 = vmatprep.subr.bf16.mxu0 0
  %158 = vmatpush1.bf16.msra.mxu0 0
  %159 = vmatprep.mubr.bf16.mxu0 0
  %160 = vmatmul.mubr.bf16.gmra.mrb[0].mxu0 %v125
  %v161 = vpop.f32.mrb[0].mxu0
  %v162 = vadd.f32 %v111, %v161
  %v163 = vpop.f32.mrb[0].mxu0
  %v164 = vpop.f32.mrb[0].mxu0
  %v165 = vpop.f32.mrb[0].mxu0
  %166 = vdwg.mxu0
  %v167 = vmul.f32 %v162, 0.2
  %v168 = vmax.f32 %v162, %v167
  %v169 = vpack.c.bf16 %v168, %v168
  %v171 = vunpack.c.l.b16 %v169
  %v172 = vpack.c.b16 %v171, %v171
  %173 = vrot.lane.b32.xlu0 %v172, 32
  %v174 = vpop.permute.xlu0 %173
  %vm176 = vcmask 519424
  %177 = vst.msk [vmem:[#allocation2] sm:$0xf] %vm176, %v174
  %s178 = scalar_lea.vmem %s3, 16
  %v179 = vld [vmem:[%s178] sm:$0xf]
  %v180 = vld [vmem:[%s178 + $0x4] sm:$0xf]
  %v181 = vld [vmem:[%s178 + $0x8] sm:$0xf]
  %v182 = vld [vmem:[%s178 + $0xc] sm:$0xf]
  %v183 = vld [vmem:[%s4 + $0x1] sm:$0x1]
  %v184 = vlaneseq
  %v185 = vshrl.u32 %v184, 7
  %v186 = vsub.s32 0, %v185
  %v187 = vrot.slane %v183, %v186
  %v192 = vunpack.c.l.b16 %v179
  %v193 = vunpack.c.l.b16 %v180
  %v194 = vunpack.c.l.b16 %v181
  %v195 = vunpack.c.l.b16 %v182
  %v196 = vpack.c.b16 %v193, %v192
  %v197 = vpack.c.b16 %v195, %v194
  %v201 = vsel %vm54, %v169, 0
  %203 = vmatprep.subr.bf16.mxu0 0
  %204 = vmatpush1.bf16.msra.mxu0 %v196
  %205 = vmatprep.subr.bf16.mxu0 0
  %206 = vmatpush1.bf16.msra.mxu0 %v197
  %207 = vmatprep.subr.bf16.mxu0 0
  %208 = vmatpush1.bf16.msra.mxu0 0
  %209 = vmatprep.subr.bf16.mxu0 0
  %210 = vmatpush1.bf16.msra.mxu0 0
  %211 = vmatprep.subr.bf16.mxu0 0
  %212 = vmatpush1.bf16.msra.mxu0 0
  %213 = vmatprep.subr.bf16.mxu0 0
  %214 = vmatpush1.bf16.msra.mxu0 0
  %215 = vmatprep.subr.bf16.mxu0 0
  %216 = vmatpush1.bf16.msra.mxu0 0
  %217 = vmatprep.subr.bf16.mxu0 0
  %218 = vmatpush1.bf16.msra.mxu0 0
  %219 = vmatprep.subr.bf16.mxu0 0
  %220 = vmatpush1.bf16.msra.mxu0 0
  %221 = vmatprep.subr.bf16.mxu0 0
  %222 = vmatpush1.bf16.msra.mxu0 0
  %223 = vmatprep.subr.bf16.mxu0 0
  %224 = vmatpush1.bf16.msra.mxu0 0
  %225 = vmatprep.subr.bf16.mxu0 0
  %226 = vmatpush1.bf16.msra.mxu0 0
  %227 = vmatprep.subr.bf16.mxu0 0
  %228 = vmatpush1.bf16.msra.mxu0 0
  %229 = vmatprep.subr.bf16.mxu0 0
  %230 = vmatpush1.bf16.msra.mxu0 0
  %231 = vmatprep.subr.bf16.mxu0 0
  %232 = vmatpush1.bf16.msra.mxu0 0
  %233 = vmatprep.subr.bf16.mxu0 0
  %234 = vmatpush1.bf16.msra.mxu0 0
  %235 = vmatprep.mubr.bf16.mxu0 0
  %236 = vmatmul.mubr.bf16.gmra.mrb[0].mxu0 %v201
  %v237 = vpop.f32.mrb[0].mxu0
  %v238 = vadd.f32 %v187, %v237
  %v239 = vpop.f32.mrb[0].mxu0
  %v240 = vpop.f32.mrb[0].mxu0
  %v241 = vpop.f32.mrb[0].mxu0
  %242 = vdwg.mxu0
  %v243 = vmul.f32 %v238, 0.2
  %v244 = vmax.f32 %v238, %v243
  %v245 = vpack.c.bf16 %v244, %v244
  %v247 = vunpack.c.l.b16 %v245
  %v248 = vpack.c.b16 %v247, %v247
  %249 = vrot.lane.b32.xlu0 %v248, 64
  %v250 = vpop.permute.xlu0 %249
  %vm252 = vcmask 781824
  %253 = vst.msk [vmem:[#allocation2] sm:$0xf] %vm252, %v250
  %s254 = scalar_lea.vmem %s3, 32
  %v255 = vld [vmem:[%s254] sm:$0xf]
  %v256 = vld [vmem:[%s254 + $0x4] sm:$0xf]
  %v257 = vld [vmem:[%s254 + $0x8] sm:$0xf]
  %v258 = vld [vmem:[%s254 + $0xc] sm:$0xf]
  %v259 = vld [vmem:[%s4 + $0x2] sm:$0x1]
  %v260 = vlaneseq
  %v261 = vshrl.u32 %v260, 7
  %v262 = vsub.s32 0, %v261
  %v263 = vrot.slane %v259, %v262
  %v268 = vunpack.c.l.b16 %v255
  %v269 = vunpack.c.l.b16 %v256
  %v270 = vunpack.c.l.b16 %v257
  %v271 = vunpack.c.l.b16 %v258
  %v272 = vpack.c.b16 %v269, %v268
  %v273 = vpack.c.b16 %v271, %v270
  %v277 = vsel %vm54, %v245, 0
  %279 = vmatprep.subr.bf16.mxu0 0
  %280 = vmatpush1.bf16.msra.mxu0 %v272
  %281 = vmatprep.subr.bf16.mxu0 0
  %282 = vmatpush1.bf16.msra.mxu0 %v273
  %283 = vmatprep.subr.bf16.mxu0 0
  %284 = vmatpush1.bf16.msra.mxu0 0
  %285 = vmatprep.subr.bf16.mxu0 0
  %286 = vmatpush1.bf16.msra.mxu0 0
  %287 = vmatprep.subr.bf16.mxu0 0
  %288 = vmatpush1.bf16.msra.mxu0 0
  %289 = vmatprep.subr.bf16.mxu0 0
  %290 = vmatpush1.bf16.msra.mxu0 0
  %291 = vmatprep.subr.bf16.mxu0 0
  %292 = vmatpush1.bf16.msra.mxu0 0
  %293 = vmatprep.subr.bf16.mxu0 0
  %294 = vmatpush1.bf16.msra.mxu0 0
  %295 = vmatprep.subr.bf16.mxu0 0
  %296 = vmatpush1.bf16.msra.mxu0 0
  %297 = vmatprep.subr.bf16.mxu0 0
  %298 = vmatpush1.bf16.msra.mxu0 0
  %299 = vmatprep.subr.bf16.mxu0 0
  %300 = vmatpush1.bf16.msra.mxu0 0
  %301 = vmatprep.subr.bf16.mxu0 0
  %302 = vmatpush1.bf16.msra.mxu0 0
  %303 = vmatprep.subr.bf16.mxu0 0
  %304 = vmatpush1.bf16.msra.mxu0 0
  %305 = vmatprep.subr.bf16.mxu0 0
  %306 = vmatpush1.bf16.msra.mxu0 0
  %307 = vmatprep.subr.bf16.mxu0 0
  %308 = vmatpush1.bf16.msra.mxu0 0
  %309 = vmatprep.subr.bf16.mxu0 0
  %310 = vmatpush1.bf16.msra.mxu0 0
  %311 = vmatprep.mubr.bf16.mxu0 0
  %312 = vmatmul.mubr.bf16.gmra.mrb[0].mxu0 %v277
  %v313 = vpop.f32.mrb[0].mxu0
  %v314 = vadd.f32 %v263, %v313
  %v315 = vpop.f32.mrb[0].mxu0
  %v316 = vpop.f32.mrb[0].mxu0
  %v317 = vpop.f32.mrb[0].mxu0
  %318 = vdwg.mxu0
  %v319 = vmul.f32 %v314, 0.2
  %v320 = vmax.f32 %v314, %v319
  %v321 = vpack.c.bf16 %v320, %v320
  %v323 = vunpack.c.l.b16 %v321
  %v324 = vpack.c.b16 %v323, %v323
  %325 = vrot.lane.b32.xlu0 %v324, 96
  %v326 = vpop.permute.xlu0 %325
  %vm328 = vcmask 1044224
  %329 = vst.msk [vmem:[#allocation2] sm:$0xf] %vm328, %v326
  %v330 = vld [vmem:[#allocation2] sm:$0xf]
  %v331 = vld [vmem:[%s5] sm:$0xf]
  %v332 = vld [vmem:[%s5 + $0x4] sm:$0xf]
  %v333 = vld [vmem:[%s5 + $0x8] sm:$0xf]
  %v334 = vld [vmem:[%s5 + $0xc] sm:$0xf]
  %v335 = vld [vmem:[%s5 + $0x10] sm:$0xf]
  %v336 = vld [vmem:[%s5 + $0x14] sm:$0xf]
  %v337 = vld [vmem:[%s5 + $0x18] sm:$0xf]
  %v338 = vld [vmem:[%s5 + $0x1c] sm:$0xf]
  %v339 = vld [vmem:[%s5 + $0x20] sm:$0xf]
  %v340 = vld [vmem:[%s5 + $0x24] sm:$0xf]
  %v341 = vld [vmem:[%s5 + $0x28] sm:$0xf]
  %v342 = vld [vmem:[%s5 + $0x2c] sm:$0xf]
  %v343 = vld [vmem:[%s5 + $0x30] sm:$0xf]
  %v344 = vld [vmem:[%s5 + $0x34] sm:$0xf]
  %v345 = vld [vmem:[%s5 + $0x38] sm:$0xf]
  %v346 = vld [vmem:[%s5 + $0x3c] sm:$0xf]
  %v347 = vld [vmem:[%s6] sm:$0x1]
  %v349 = vlaneseq
  %v350 = vshrl.u32 %v349, 7
  %v351 = vsub.s32 0, %v350
  %v352 = vrot.slane %v347, %v351
  %v370 = vunpack.c.l.b16 %v331
  %v371 = vunpack.c.l.b16 %v332
  %v372 = vunpack.c.l.b16 %v333
  %v373 = vunpack.c.l.b16 %v334
  %v374 = vunpack.c.l.b16 %v335
  %v375 = vunpack.c.l.b16 %v336
  %v376 = vunpack.c.l.b16 %v337
  %v377 = vunpack.c.l.b16 %v338
  %v378 = vunpack.c.l.b16 %v339
  %v379 = vunpack.c.l.b16 %v340
  %v380 = vunpack.c.l.b16 %v341
  %v381 = vunpack.c.l.b16 %v342
  %v382 = vunpack.c.l.b16 %v343
  %v383 = vunpack.c.l.b16 %v344
  %v384 = vunpack.c.l.b16 %v345
  %v385 = vunpack.c.l.b16 %v346
  %v386 = vpack.c.b16 %v371, %v370
  %v387 = vpack.c.b16 %v373, %v372
  %v388 = vpack.c.b16 %v375, %v374
  %v389 = vpack.c.b16 %v377, %v376
  %v390 = vpack.c.b16 %v379, %v378
  %v391 = vpack.c.b16 %v381, %v380
  %v392 = vpack.c.b16 %v383, %v382
  %v393 = vpack.c.b16 %v385, %v384
  %402 = vmatprep.subr.bf16.mxu0 0
  %403 = vmatpush1.bf16.msra.mxu0 %v386
  %404 = vmatprep.subr.bf16.mxu0 0
  %405 = vmatpush1.bf16.msra.mxu0 %v387
  %406 = vmatprep.subr.bf16.mxu0 0
  %407 = vmatpush1.bf16.msra.mxu0 %v388
  %408 = vmatprep.subr.bf16.mxu0 0
  %409 = vmatpush1.bf16.msra.mxu0 %v389
  %410 = vmatprep.subr.bf16.mxu0 0
  %411 = vmatpush1.bf16.msra.mxu0 %v390
  %412 = vmatprep.subr.bf16.mxu0 0
  %413 = vmatpush1.bf16.msra.mxu0 %v391
  %414 = vmatprep.subr.bf16.mxu0 0
  %415 = vmatpush1.bf16.msra.mxu0 %v392
  %416 = vmatprep.subr.bf16.mxu0 0
  %417 = vmatpush1.bf16.msra.mxu0 %v393
  %418 = vmatprep.subr.bf16.mxu0 0
  %419 = vmatpush1.bf16.msra.mxu0 0
  %420 = vmatprep.subr.bf16.mxu0 0
  %421 = vmatpush1.bf16.msra.mxu0 0
  %422 = vmatprep.subr.bf16.mxu0 0
  %423 = vmatpush1.bf16.msra.mxu0 0
  %424 = vmatprep.subr.bf16.mxu0 0
  %425 = vmatpush1.bf16.msra.mxu0 0
  %426 = vmatprep.subr.bf16.mxu0 0
  %427 = vmatpush1.bf16.msra.mxu0 0
  %428 = vmatprep.subr.bf16.mxu0 0
  %429 = vmatpush1.bf16.msra.mxu0 0
  %430 = vmatprep.subr.bf16.mxu0 0
  %431 = vmatpush1.bf16.msra.mxu0 0
  %432 = vmatprep.subr.bf16.mxu0 0
  %433 = vmatpush1.bf16.msra.mxu0 0
  %434 = vmatprep.mubr.bf16.mxu0 0
  %435 = vmatmul.mubr.bf16.gmra.mrb[0].mxu0 %v330
  %v436 = vpop.f32.mrb[0].mxu0
  %v437 = vadd.f32 %v352, %v436
  %v438 = vpop.f32.mrb[0].mxu0
  %v439 = vpop.f32.mrb[0].mxu0
  %v440 = vpop.f32.mrb[0].mxu0
  %441 = vdwg.mxu0
  %v442 = vxor.u32 %v437, 2147483648
  %v443 = vmul.f32 %v442, 1.442695
  %v444 = vpow.pop %v443
  %v445 = vadd.f32 %v444, 1.0
  %v446 = vrcp.pop %v445
  %v447 = vmul.f32 1.0, %v446
  %v448 = vld [vmem:[%s7] sm:$0xff]
  %v449 = vmul.f32 %v447, %v448
  %vm450 = vcmask 31744
  %451 = vst.msk [vmem:[%s8] sm:$0xff] %vm450, %v449
  // Predicated region
  $region34: #{tpu_custom_call.1} parent=0 // pred_check
    _
  $region35: #{tpu_custom_call.1} parent=0 // pred_check_branch
    %453 = sbr.rel (0) target = $region37
  $region36: #{tpu_custom_call.1} parent=0 // pred_region
    _
  $region37: #{tpu_custom_call.1} parent=0 // pred_fallthru
    _
  // Predicated region
  $region38: #{tpu_custom_call.1} parent=0 // pred_check
    _
  $region39: #{tpu_custom_call.1} parent=0 // pred_check_branch
    %455 = sbr.rel (0) target = $region41
  $region40: #{tpu_custom_call.1} parent=0 // pred_region
    _
  $region41: #{tpu_custom_call.1} parent=0 // pred_fallthru
    _

</llo_original>
